<compile_context>
chip_gen: v5e
topology: v5e:2x2
jax: 0.10.0
libtpu: 0.0.40
codegen_flags: <defaults>
</compile_context>

<pallas_src>
import functools
import math

import jax
import jax.numpy as jnp
from jax.experimental import pallas as pl
from jax.experimental.pallas import tpu as pltpu


MAX_TILE_ROWS = 2048          # 2048 x 128 x 4B = 1 MiB per f32 input block


def _round_up(x, m):
    return (x + m - 1) // m * m


# ---------------------------------------------------------------------------
# Kernel: grid = (B, nsplit, tiles_per_split).  Reduces sum of squared diff
# over the pixel tiles of one (batch, split) pair; writes per-vreg partial
# sums at the last tile.
# ---------------------------------------------------------------------------
def _mse_kernel(img_in_ref, img_rec_ref, out_ref, acc_ref, *,
                tile_rows, tiles_per_split, valid_rows, acc_sub, need_mask):
    t = pl.program_id(2)

    @pl.when(t == 0)
    def _():
        acc_ref[...] = jnp.zeros_like(acc_ref)

    # Upcast on load: inputs stay in their native dtype in HBM (no wrapper copy).
    a = img_in_ref[...].astype(jnp.float32)
    b = img_rec_ref[...].astype(jnp.float32)
    d = a - b
    sq = d * d                                           # (1, tile_rows, 128)

    if need_mask:
        # The last (partial) block reads unspecified data past the end of the
        # array; mask those rows out (jnp.where selects, so garbage/NaN in the
        # masked region cannot propagate).
        s = pl.program_id(1)
        row0 = (s * tiles_per_split + t) * tile_rows
        row_idx = row0 + jax.lax.broadcasted_iota(jnp.int32, sq.shape, 1)
        sq = jnp.where(row_idx < valid_rows, sq, 0.0)

    if acc_sub == 8:
        # Full (8,128) vreg accumulator: the per-tile reduction is pure VPU
        # adds across aligned sub-blocks of 8 sublanes (layout-preserving
        # reshape, no cross-sublane XLU work in the steady-state loop).
        acc_ref[...] += jnp.sum(sq.reshape(tile_rows // 8, 8, 128), axis=0)
    else:
        # Tiny-image fallback (tile_rows not a multiple of 8, single tile).
        acc_ref[...] += jnp.sum(sq, axis=1)              # (1, 128)

    @pl.when(t == pl.num_programs(2) - 1)
    def _():
        out_ref[...] = acc_ref[...].reshape(out_ref.shape)


# ---------------------------------------------------------------------------
# Pallas wrapper: per-batch MSE over all non-batch dims.
# ---------------------------------------------------------------------------
def _per_batch_mse(inputs, reconstructions):
    assert inputs.shape == reconstructions.shape
    B = inputs.shape[0]
    n = math.prod(inputs.shape[1:])

    # ---- lane-dense (B, rows, 128) view.  For the typical case (n % 128 == 0)
    # this is a free reshape; otherwise pad only the final partial 128-lane row
    # with zeros (identical zeros in both images -> contributes 0 to the sum).
    n128 = _round_up(n, 128)
    rows = n128 // 128

    def prep(x):
        x = x.reshape(B, n)
        if n128 != n:
            x = jnp.pad(x, ((0, 0), (0, n128 - n)))
        return x.reshape(B, rows, 128)

    img_in = prep(inputs)
    img_rec = prep(reconstructions)

    # ---- tiling: biggest tile that comfortably fits VMEM (1 MiB f32 block;
    # 2 inputs x 2 pipeline buffers = 4 MiB).  No row padding: a partial last
    # tile is masked inside the kernel.
    tile_rows = rows if rows <= MAX_TILE_ROWS else MAX_TILE_ROWS
    num_tiles = (rows + tile_rows - 1) // tile_rows
    need_mask = (rows % tile_rows) != 0

    # ---- v7x: with B == 1 the batch axis cannot feed both TensorCores, so add
    # a second "parallel" axis that splits the pixel-tile range in half (only
    # when the split is exact, so no fully out-of-bounds blocks are created).
    nsplit = 2 if (B == 1 and num_tiles >= 2 and num_tiles % 2 == 0) else 1
    tiles_per_split = num_tiles // nsplit

    acc_sub = 8 if tile_rows % 8 == 0 else 1
    itemsize = jnp.dtype(inputs.dtype).itemsize

    kernel = functools.partial(
        _mse_kernel, tile_rows=tile_rows, tiles_per_split=tiles_per_split,
        valid_rows=rows, acc_sub=acc_sub, need_mask=need_mask)

    out = pl.pallas_call(
        kernel,
        out_shape=jax.ShapeDtypeStruct((B, nsplit, acc_sub, 128), jnp.float32),
        grid_spec=pltpu.PrefetchScalarGridSpec(
            num_scalar_prefetch=0,
            grid=(B, nsplit, tiles_per_split),
            in_specs=[
                pl.BlockSpec((1, tile_rows, 128),
                             lambda b, s, t: (b, s * tiles_per_split + t, 0)),
                pl.BlockSpec((1, tile_rows, 128),
                             lambda b, s, t: (b, s * tiles_per_split + t, 0)),
            ],
            out_specs=pl.BlockSpec((1, 1, acc_sub, 128),
                                   lambda b, s, t: (b, s, 0, 0)),
            scratch_shapes=[pltpu.VMEM((acc_sub, 128), jnp.float32)],
        ),
        compiler_params=pltpu.CompilerParams(
            dimension_semantics=("parallel", "parallel", "arbitrary")),
        cost_estimate=pl.CostEstimate(
            flops=3 * B * n,
            transcendentals=0,
            bytes_accessed=2 * B * n * itemsize + B * nsplit * acc_sub * 128 * 4),
    )(img_in, img_rec)

    # Final cross-lane / cross-split reduce is O(B * nsplit * 1024): plain XLA.
    return out.reshape(B, -1).sum(axis=-1) / jnp.float32(n)


# ---------------------------------------------------------------------------
# Per-batch losses: Pallas MSE + plain-JAX HSC (the secret loss is O(B*L);
# per perf review it is cheaper outside the kernel).
# ---------------------------------------------------------------------------
@jax.jit
def _per_batch_losses(inputs, reconstructions, secrets_true, secrets_false,
                      center):
    mse = _per_batch_mse(inputs, reconstructions)

    st = secrets_true.astype(jnp.float32)
    sf = secrets_false.astype(jnp.float32)
    c = center.astype(jnp.float32)
    var_t = jnp.sqrt(jnp.sum((st - c) ** 2, axis=1) + 1.0) - 1.0
    var_f = jnp.sqrt(jnp.sum((sf - c) ** 2, axis=1) + 1.0) - 1.0
    hsc_pos = var_t                                           # labels == 1
    hsc_neg = -jnp.log(1.0 - jnp.exp(-0.3 * var_f) + 1e-9)    # labels == 0
    return mse, hsc_pos, hsc_neg


# ---------------------------------------------------------------------------
# Python wrapper mirroring the torch.nn.Module (ramp / weighting stay
# host-side, matching the .item() semantics of the original forward).
# ---------------------------------------------------------------------------
class HscMsePallas:
    def __init__(self, secret_weight=10.0, ramp=10000, max_image_weight_ratio=2.0,
                 mse_weight=1.0):
        self.secret_weight = secret_weight
        self.ramp = ramp
        self.max_image_weight = max_image_weight_ratio * secret_weight - 1
        self.ramp_on = False
        self.step0 = 1.0e9
        self.mse_weight = mse_weight        # kept (unused in forward, as in spec)
        self.center = None
        # TODO(synk): ciede2000_loss (self.mse_color) is constructed but never
        # used in the original forward, so it is not implemented here.

    def activate_ramp(self, global_step):
        if not self.ramp_on:
            self.step0 = float(global_step)
            self.ramp_on = True
            print('[TRAINING] Activate ramp for image loss at step ', global_step)

    def update(self, center):
        self.center = jnp.asarray(center, jnp.float32)

    def __call__(self, inputs, reconstructions, secrets_true, secrets_false,
                 global_step):
        mse_loss, hsc_pos, hsc_neg = _per_batch_losses(
            inputs, reconstructions, secrets_true, secrets_false, self.center)

        loss = mse_loss
        secret_loss = (hsc_pos + hsc_neg) / 2
        image_weight = 1 + min(
            self.max_image_weight,
            max(0.0, self.max_image_weight * (global_step - self.step0) / self.ramp))
        loss = (loss * image_weight + secret_loss * self.secret_weight) / (
            image_weight + self.secret_weight)

        loss_dict = {
            'loss': float(loss.mean()),
            'mse_loss': float(mse_loss.mean()),
            'hsc_pos': float(hsc_pos.mean()),
            'hsc_neg': float(hsc_neg.mean()),
        }
        return loss.mean(), loss_dict


# ---------------------------------------------------------------------------
# Pure-JAX reference for validation.
# ---------------------------------------------------------------------------
def _reference_per_batch(inputs, recon, secrets_true, secrets_false, center):
    x = inputs.astype(jnp.float32)
    y = recon.astype(jnp.float32)
    mse = jnp.mean((x - y) ** 2, axis=tuple(range(1, x.ndim)))

    def hsc(s, label):
        s = s.astype(jnp.float32)
        var = jnp.sqrt(jnp.sum((s - center) ** 2, axis=1) + 1.0) - 1.0
        neg = -jnp.log(1.0 - jnp.exp(-0.3 * var) + 1e-9)
        return var if label == 1 else neg

    return mse, hsc(secrets_true, 1), hsc(secrets_false, 0)


if __name__ == "__main__":
    key = jax.random.PRNGKey(0)
    k1, k2, k3, k4, k5 = jax.random.split(key, 5)

    # ---- primary small example: (B, C, H, W) = (2, 3, 16, 16), L = 32.
    B, C, H, W, L = 2, 3, 16, 16, 32
    inputs = jax.random.uniform(k1, (B, C, H, W), jnp.float32)
    reconstructions = jnp.clip(
        inputs + 0.05 * jax.random.normal(k2, (B, C, H, W), jnp.float32), 0.0, 1.0)
    secrets_true = jax.random.normal(k3, (B, L), jnp.float32)
    secrets_false = jax.random.normal(k4, (B, L), jnp.float32)
    center = jax.random.normal(k5, (L,), jnp.float32)

    loss_fn = HscMsePallas()
    loss_fn.update(center)
    loss, loss_dict = loss_fn(inputs, reconstructions, secrets_true,
                              secrets_false, global_step=1000)
    loss = jax.block_until_ready(loss)

    ctr32 = jnp.asarray(center, jnp.float32)

    def check(inp, rec, st, sf, c, rtol=1e-4, atol=1e-5):
        got = _per_batch_losses(inp, rec, st, sf, c)
        want = _reference_per_batch(inp, rec, st, sf, c)
        for g, w in zip(got, want):
            g = jax.block_until_ready(g)
            assert jnp.allclose(g, w, rtol=rtol, atol=atol), (g, w)

    # small single-tile path
    check(inputs, reconstructions, secrets_true, secrets_false, ctr32)

    # B == 1 large image: exercises multi-tile + masked partial tail + the
    # core-parallel split of the pixel-tile axis.
    x1 = jax.random.uniform(k1, (1, 3, 300, 300), jnp.float32)
    y1 = jnp.clip(x1 + 0.03 * jax.random.normal(k2, x1.shape, jnp.float32), 0.0, 1.0)
    check(x1, y1, secrets_true[:1], secrets_false[:1], ctr32)

    # bf16 images: kernel reads the native dtype and upcasts in-register.
    xb = jax.random.uniform(k1, (2, 4, 32, 32), jnp.float32)
    yb = jnp.clip(xb + 0.05 * jax.random.normal(k2, xb.shape, jnp.float32), 0.0, 1.0)
    check(xb.astype(jnp.bfloat16), yb.astype(jnp.bfloat16),
          secrets_true, secrets_false, ctr32, rtol=1e-3)

    print("KERNEL_OK")
</pallas_src>

<mosaic_0001>
module attributes {stable_mosaic.version = 11 : i64} {
  func.func @_mse_kernel(%arg0: i32, %arg1: i32, %arg2: i32, %arg3: memref<1x6x128xf32, #tpu.memory_space<vmem>>, %arg4: memref<1x6x128xf32, #tpu.memory_space<vmem>>, %arg5: memref<1x1x1x128xf32, #tpu.memory_space<vmem>>, %arg6: memref<1x128xf32, #tpu.memory_space<vmem>>) attributes {dimension_semantics = [#tpu.dimension_semantics<parallel>, #tpu.dimension_semantics<parallel>, #tpu.dimension_semantics<arbitrary>], iteration_bounds = array<i64: 2, 1, 1>, scalar_prefetch = 0 : i64, scratch_operands = 1 : i64, tpu.core_type = #tpu.core_type<tc>, window_params = [{transform_indices = @transform_0, window_bounds = array<i64: 1, 6, 128>}, {transform_indices = @transform_1, window_bounds = array<i64: 1, 6, 128>}, {transform_indices = @transform_2, window_bounds = array<i64: 1, 1, 1, 128>}]} {
    %c0_i32 = arith.constant 0 : i32
    %0 = arith.cmpi eq, %arg2, %c0_i32 : i32
    %1 = arith.extui %0 : i1 to i32
    %c0_i32_0 = arith.constant 0 : i32
    %2 = arith.cmpi ne, %1, %c0_i32_0 : i32
    scf.if %2 {
      %cst_12 = arith.constant 0.000000e+00 : f32
      %14 = vector.broadcast %cst_12 : f32 to vector<1x128xf32>
      %c0_13 = arith.constant 0 : index
      %c0_14 = arith.constant 0 : index
      %15 = vector.load %arg6[%c0_13, %c0_14] : memref<1x128xf32, #tpu.memory_space<vmem>>, vector<1x128xf32>
      tpu.vector_store %arg6[%c0_13, %c0_14], %14 {strides = array<i32>} : memref<1x128xf32, #tpu.memory_space<vmem>>, vector<1x128xf32>,
    } else {
    }
    %c0 = arith.constant 0 : index
    %c0_1 = arith.constant 0 : index
    %c0_2 = arith.constant 0 : index
    %3 = vector.load %arg3[%c0, %c0_1, %c0_2] : memref<1x6x128xf32, #tpu.memory_space<vmem>>, vector<1x6x128xf32>
    %c0_3 = arith.constant 0 : index
    %c0_4 = arith.constant 0 : index
    %c0_5 = arith.constant 0 : index
    %4 = vector.load %arg4[%c0_3, %c0_4, %c0_5] : memref<1x6x128xf32, #tpu.memory_space<vmem>>, vector<1x6x128xf32>
    %5 = arith.subf %3, %4 : vector<1x6x128xf32>
    %6 = arith.mulf %5, %5 : vector<1x6x128xf32>
    %c0_6 = arith.constant 0 : index
    %c0_7 = arith.constant 0 : index
    %7 = vector.load %arg6[%c0_6, %c0_7] : memref<1x128xf32, #tpu.memory_space<vmem>>, vector<1x128xf32>
    %cst = arith.constant dense<0.000000e+00> : vector<1x128xf32>
    %8 = vector.multi_reduction <add>, %6, %cst [1] : vector<1x6x128xf32> to vector<1x128xf32>
    %9 = arith.addf %7, %8 : vector<1x128xf32>
    %c0_8 = arith.constant 0 : index
    %c0_9 = arith.constant 0 : index
    %10 = vector.load %arg6[%c0_8, %c0_9] : memref<1x128xf32, #tpu.memory_space<vmem>>, vector<1x128xf32>
    tpu.vector_store %arg6[%c0_8, %c0_9], %9 {strides = array<i32>} : memref<1x128xf32, #tpu.memory_space<vmem>>, vector<1x128xf32>,
    %c0_i32_10 = arith.constant 0 : i32
    %11 = arith.cmpi eq, %arg2, %c0_i32_10 : i32
    %12 = arith.extui %11 : i1 to i32
    %c0_i32_11 = arith.constant 0 : i32
    %13 = arith.cmpi ne, %12, %c0_i32_11 : i32
    scf.if %13 {
      %c0_12 = arith.constant 0 : index
      %c0_13 = arith.constant 0 : index
      %14 = vector.load %arg6[%c0_12, %c0_13] : memref<1x128xf32, #tpu.memory_space<vmem>>, vector<1x128xf32>
      %15 = vector.shape_cast %14 : vector<1x128xf32> to vector<1x1x1x128xf32>
      %c0_14 = arith.constant 0 : index
      %c0_15 = arith.constant 0 : index
      %c0_16 = arith.constant 0 : index
      %c0_17 = arith.constant 0 : index
      %16 = vector.load %arg5[%c0_14, %c0_15, %c0_16, %c0_17] : memref<1x1x1x128xf32, #tpu.memory_space<vmem>>, vector<1x1x1x128xf32>
      tpu.vector_store %arg5[%c0_14, %c0_15, %c0_16, %c0_17], %15 {strides = array<i32>} : memref<1x1x1x128xf32, #tpu.memory_space<vmem>>, vector<1x1x1x128xf32>,
    } else {
    }
    return
  }
  func.func @transform_0(%arg0: i32, %arg1: i32, %arg2: i32) -> (i32, i32, i32) {
    %c1_i32 = arith.constant 1 : i32
    %0 = arith.muli %arg1, %c1_i32 : i32
    %1 = arith.addi %0, %arg2 : i32
    %c0_i32 = arith.constant 0 : i32
    %c0_i32_0 = arith.constant 0 : i32
    return %arg0, %1, %c0_i32 : i32, i32, i32
  }
  func.func @transform_1(%arg0: i32, %arg1: i32, %arg2: i32) -> (i32, i32, i32) {
    %c1_i32 = arith.constant 1 : i32
    %0 = arith.muli %arg1, %c1_i32 : i32
    %1 = arith.addi %0, %arg2 : i32
    %c0_i32 = arith.constant 0 : i32
    %c0_i32_0 = arith.constant 0 : i32
    return %arg0, %1, %c0_i32 : i32, i32, i32
  }
  func.func @transform_2(%arg0: i32, %arg1: i32, %arg2: i32) -> (i32, i32, i32, i32) {
    %c0_i32 = arith.constant 0 : i32
    %c0_i32_0 = arith.constant 0 : i32
    %c0_i32_1 = arith.constant 0 : i32
    return %arg0, %arg1, %c0_i32, %c0_i32_0 : i32, i32, i32, i32
  }
}

</mosaic_0001>

<llo_original>
// kernel: _per_batch_losses.1
$region0: #{_per_batch_losses.1}
  #allocation0 [shape = 'u32[]', space=smem, size = 0x4, offset = 0x4, fixed_abs, tag = 'smem constant byte address 0x4 - core index']
  #allocation1 [shape = 'u32[72,128]{1,0:T(1,128)}', space=vmem, size = 0x9000, scoped, tag = 'internal scratch']
  #allocation2 [shape = 'f32[1,128]{1,0:T(1,128)}', space=vmem, size = 0x200, scoped, tag = 'scratch operand']
  %s0 = inlined_call_operand.vmem [shape: f32[2,6,128], index: 0, kind: input, shape index: {}]
  %s1 = inlined_call_operand.vmem [shape: f32[2,6,128], index: 1, kind: input, shape index: {}]
  %s2 = inlined_call_operand.vmem [shape: f32[2,1,1,128], index: 2, kind: output, shape index: {}]
  %s3 = sld [smem:[#allocation0]]
  $region49: #{_per_batch_losses.1} parent=0
    _
  %s5 = ssub.s32 1, %s3
  %s6 = scalar_select 0, %s5, %s3
  loop: start=0, step=1, limit=4
  $region2: #{_per_batch_losses.1} parent=0 // loop_pre_header
    _
  $region3: #{_per_batch_losses.1} parent=0 // loop_header
    %s8 = sphi 0, %s12
    %p9 = scmp.ge.s32.totalorder %s8, 4
    %s15 = sphi 0, %s34
    %s16 = sphi 0, %s30
    %s17 = sphi 0, %s26
    %s18 = sphi 0, %s15
    %s19 = sphi 0, %s16
    %s20 = sphi 0, %s17
    %s21 = sphi 0, %s18
    %s22 = sphi 0, %s19
    %s23 = sphi 0, %s20
    %s41 = sphi 0, %s43
    %s44 = sphi 0, %s41
    %s45 = sphi 0, %s44
    %s61 = sphi 0, %s45
    %s71 = sphi 0, %s73
    %s74 = sphi 0, %s71
    %s75 = sphi 0, %s74
    %s91 = sphi 0, %s75
    %s99 = sphi 0, %s101
    %s102 = sphi 0, %s99
    %s103 = sphi 0, %s102
    %s119 = sphi 0, %s103
  $region4: #{_per_batch_losses.1} parent=0 // loop_header_branch
    %11 = sbr.rel (%p9) target = $region8
  $region5: #{_per_batch_losses.1} parent=0 // loop_body
    %s13 = ssub.s32 %s8, 1
    %s14 = ssub.s32 %s8, 2
    %s24 = sadd.s32 1, %s17
    %p25 = scmp.ge.s32.totalorder %s24, 1
    %s26 = scalar_select %p25, 0, %s24
    %s27 = sadd.s32 1, %s16
    %s28 = scalar_select %p25, %s27, %s16
    %p29 = scmp.ge.s32.totalorder %s28, 1
    %s30 = scalar_select %p29, 0, %s28
    %s31 = sadd.s32 1, %s15
    %s32 = scalar_select %p29, %s31, %s15
    %p33 = scmp.ge.s32.totalorder %s32, 2
    %s34 = scalar_select %p33, 0, %s32
    %s35 = sadd.s32 %s16, %s17
    %s36 = sadd.s32 %s30, %s26
    %s37 = ssub.s32 %s15, %s34
    %s38 = ssub.s32 %s35, %s36
    %s39 = sor.u32 %s37, %s38
    %p40 = scmp.eq.s32.totalorder %s39, 0
    %s42 = sadd.s32 %s41, 1
    %s43 = scalar_select %p40, %s41, %s42
    %p46 = pneg %p40
    %p47 = scmp.eq.s32.totalorder %s8, 1
    %p48 = por %p46, %p47
    %p49 = scmp.ne.s32.totalorder %s41, %s44
    %p50 = scmp.eq.s32.totalorder %s8, 0
    %p51 = por %p49, %p50
    %p52 = scmp.ne.s32.totalorder %s41, %s44
    %p53 = scmp.eq.s32.totalorder %s13, 1
    %p54 = por %p52, %p53
    %p55 = scmp.ne.s32.totalorder %s44, %s45
    %p56 = scmp.eq.s32.totalorder %s13, 0
    %p57 = por %p55, %p56
    %p58 = scmp.ne.s32.totalorder %s44, %s45
    %p59 = scmp.eq.s32.totalorder %s14, 1
    %p60 = por %p58, %p59
    %p62 = scmp.ne.s32.totalorder %s45, %s61
    %p63 = scmp.eq.s32.totalorder %s14, 0
    %p64 = por %p62, %p63
    %s65 = sadd.s32 %s16, %s17
    %s66 = sadd.s32 %s30, %s26
    %s67 = ssub.s32 %s15, %s34
    %s68 = ssub.s32 %s65, %s66
    %s69 = sor.u32 %s67, %s68
    %p70 = scmp.eq.s32.totalorder %s69, 0
    %s72 = sadd.s32 %s71, 1
    %s73 = scalar_select %p70, %s71, %s72
    %p76 = pneg %p70
    %p77 = scmp.eq.s32.totalorder %s8, 1
    %p78 = por %p76, %p77
    %p79 = scmp.ne.s32.totalorder %s71, %s74
    %p80 = scmp.eq.s32.totalorder %s8, 0
    %p81 = por %p79, %p80
    %p82 = scmp.ne.s32.totalorder %s71, %s74
    %p83 = scmp.eq.s32.totalorder %s13, 1
    %p84 = por %p82, %p83
    %p85 = scmp.ne.s32.totalorder %s74, %s75
    %p86 = scmp.eq.s32.totalorder %s13, 0
    %p87 = por %p85, %p86
    %p88 = scmp.ne.s32.totalorder %s74, %s75
    %p89 = scmp.eq.s32.totalorder %s14, 1
    %p90 = por %p88, %p89
    %p92 = scmp.ne.s32.totalorder %s75, %s91
    %p93 = scmp.eq.s32.totalorder %s14, 0
    %p94 = por %p92, %p93
    %s95 = ssub.s32 %s15, %s34
    %s96 = ssub.s32 %s16, %s30
    %s97 = sor.u32 %s95, %s96
    %p98 = scmp.eq.s32.totalorder %s97, 0
    %s100 = sadd.s32 %s99, 1
    %s101 = scalar_select %p98, %s99, %s100
    %p104 = pneg %p98
    %p105 = scmp.eq.s32.totalorder %s8, 1
    %p106 = por %p104, %p105
    %p107 = scmp.ne.s32.totalorder %s99, %s102
    %p108 = scmp.eq.s32.totalorder %s8, 0
    %p109 = por %p107, %p108
    %p110 = scmp.ne.s32.totalorder %s99, %s102
    %p111 = scmp.eq.s32.totalorder %s13, 1
    %p112 = por %p110, %p111
    %p113 = scmp.ne.s32.totalorder %s102, %s103
    %p114 = scmp.eq.s32.totalorder %s13, 0
    %p115 = por %p113, %p114
    %p116 = scmp.ne.s32.totalorder %s102, %s103
    %p117 = scmp.eq.s32.totalorder %s14, 1
    %p118 = por %p116, %p117
    %p120 = scmp.ne.s32.totalorder %s103, %s119
    %p121 = scmp.eq.s32.totalorder %s14, 0
    %p122 = por %p120, %p121
    %p123 = scmp.le.s32.totalorder 1, %s8
    %p124 = scmp.lt.s32.totalorder %s8, 3
    %p125 = pnand %p123, %p124
    %p126 = pneg %p125
    // Predicated region
    $region9: #{_per_batch_losses.1} parent=5 // pred_check
      _
    $region10: #{_per_batch_losses.1} parent=5 // pred_check_branch
      %128 = sbr.rel (%p125) target = $region12
    $region11: #{_per_batch_losses.1} parent=5 // pred_region
      %s129 = ssub.s32 %s8, 1
    $region12: #{_per_batch_losses.1} parent=5 // pred_fallthru
      _
    %p130 = scmp.lt.s32.totalorder %s8, 2
    // Predicated region
    $region13: #{_per_batch_losses.1} parent=5 // pred_check
      %p131 = pneg %p130
    $region14: #{_per_batch_losses.1} parent=5 // pred_check_branch
      %133 = sbr.rel (%p131) target = $region16
    $region15: #{_per_batch_losses.1} parent=5 // pred_region
      // Predicated region
      $region17: #{_per_batch_losses.1} parent=15 // pred_check
        %p134 = pneg %p51
      $region18: #{_per_batch_losses.1} parent=15 // pred_check_branch
        %136 = sbr.rel (%p134) target = $region20
      $region19: #{_per_batch_losses.1} parent=15 // pred_region
        %s137 = sadd.s32 %s16, %s17
        %p138 = scmp.lt.s32.totalorder %s15, 1
        %s139 = scalar_select %p138, %s15, 1
        %p140 = scmp.lt.s32.totalorder %s137, 0
        %s141 = scalar_select %p140, %s137, 0
        %s142 = sadd.s32 %s141, %s139
        %s143 = smul.addr %s142, 8
        %s144 = scalar_lea.vmem %s0, %s143
        %s145 = sadd.s32 %s16, %s17
      $region20: #{_per_batch_losses.1} parent=15 // pred_fallthru
        _
      // Predicated region
      $region21: #{_per_batch_losses.1} parent=15 // pred_check
        %p146 = pneg %p81
      $region22: #{_per_batch_losses.1} parent=15 // pred_check_branch
        %148 = sbr.rel (%p146) target = $region24
      $region23: #{_per_batch_losses.1} parent=15 // pred_region
        %s149 = sadd.s32 %s16, %s17
        %p150 = scmp.lt.s32.totalorder %s15, 1
        %s151 = scalar_select %p150, %s15, 1
        %p152 = scmp.lt.s32.totalorder %s149, 0
        %s153 = scalar_select %p152, %s149, 0
        %s154 = sadd.s32 %s153, %s151
        %s155 = smul.addr %s154, 8
        %s156 = scalar_lea.vmem %s1, %s155
        %s157 = sadd.s32 %s16, %s17
      $region24: #{_per_batch_losses.1} parent=15 // pred_fallthru
        _
    $region16: #{_per_batch_losses.1} parent=5 // pred_fallthru
      _
    %p158 = scmp.le.s32.totalorder 1, %s8
    %p159 = scmp.lt.s32.totalorder %s8, 3
    %p160 = pnand %p158, %p159
    %p161 = pneg %p160
    // Predicated region
    $region25: #{_per_batch_losses.1} parent=5 // pred_check
      _
    $region26: #{_per_batch_losses.1} parent=5 // pred_check_branch
      %163 = sbr.rel (%p160) target = $region28
    $region27: #{_per_batch_losses.1} parent=5 // pred_region
      %s164 = ssub.s32 %s8, 1
      %s165 = sadd.s32 %s19, %s20
      %p166 = scmp.lt.s32.totalorder %s18, 1
      %s167 = scalar_select %p166, %s18, 1
      %p168 = scmp.lt.s32.totalorder %s165, 0
      %s169 = scalar_select %p168, %s165, 0
      %s170 = sadd.s32 %s169, %s167
      %s171 = smul.addr %s170, 8
      %s172 = scalar_lea.vmem %s0, %s171
      %p173 = pneg %p57
      %p174 = pneg %p54
      %s175 = sadd.s32 %s19, %s20
      %p176 = scmp.lt.s32.totalorder %s18, 1
      %s177 = scalar_select %p176, %s18, 1
      %p178 = scmp.lt.s32.totalorder %s175, 0
      %s179 = scalar_select %p178, %s175, 0
      %s180 = sadd.s32 %s179, %s177
      %s181 = smul.addr %s180, 8
      %s182 = scalar_lea.vmem %s1, %s181
      %p183 = pneg %p87
      %p184 = pneg %p84
      %p185 = pneg %p115
      %p186 = pneg %p112
      %p187 = scmp.lt.s32.totalorder %s18, 1
      %s188 = scalar_select %p187, %s18, 1
      %p189 = scmp.lt.s32.totalorder %s19, 0
      %s190 = scalar_select %p189, %s19, 0
      %s191 = sadd.s32 %s190, %s188
      %s192 = scalar_lea.vmem %s2, %s191
      %s193 = sadd.s32 %s19, %s20
      %p194 = scmp.lt.s32.totalorder %s18, 1
      %s195 = scalar_select %p194, %s18, 1
      %p196 = scmp.lt.s32.totalorder %s193, 0
      %s197 = scalar_select %p196, %s193, 0
      %s198 = sadd.s32 %s197, %s195
      %s199 = smul.addr %s198, 8
      %s200 = scalar_lea.vmem %s0, %s199
      %s201 = sadd.s32 %s19, %s20
      %s202 = sadd.s32 %s19, %s20
      %p203 = scmp.lt.s32.totalorder %s18, 1
      %s204 = scalar_select %p203, %s18, 1
      %p205 = scmp.lt.s32.totalorder %s202, 0
      %s206 = scalar_select %p205, %s202, 0
      %s207 = sadd.s32 %s206, %s204
      %s208 = smul.addr %s207, 8
      %s209 = scalar_lea.vmem %s1, %s208
      %s210 = sadd.s32 %s19, %s20
      %p211 = scmp.lt.s32.totalorder %s18, 1
      %s212 = scalar_select %p211, %s18, 1
      %p213 = scmp.lt.s32.totalorder %s19, 0
      %s214 = scalar_select %p213, %s19, 0
      %s215 = sadd.s32 %s214, %s212
      %s216 = scalar_lea.vmem %s2, %s215
      %p217 = scmp.eq.s32.totalorder %s20, 0
      // Predicated region
      $region29: #{_per_batch_losses.1} parent=27 // pred_check
        %p218 = pneg %p217
      $region30: #{_per_batch_losses.1} parent=27 // pred_check_branch
        %220 = sbr.rel (%p218) target = $region32
      $region31: #{_per_batch_losses.1} parent=27 // pred_region
        %221 = vst [vmem:[#allocation2] sm:$0x1] 0.0
      $region32: #{_per_batch_losses.1} parent=27 // pred_fallthru
        _
      %v222 = vld [vmem:[%s200] sm:$0x3f]
      %v223 = vld [vmem:[%s209] sm:$0x3f]
      %v224 = vsub.f32 %v222, %v223
      %v225 = vmul.f32 %v224, %v224
      %v226 = vld [vmem:[#allocation2] sm:$0x1]
      %vm227 = vcmask 1045504
      %v228 = vsel %vm227, %v225, 0.0
      %v229 = vrot.slane %v228, 4
      %v230 = vadd.f32 %v228, %v229
      %v231 = vrot.slane %v230, 2
      %v232 = vadd.f32 %v230, %v231
      %v233 = vrot.slane %v232, 1
      %v234 = vadd.f32 %v232, %v233
      %v235 = vadd.f32 %v226, %v234
      %236 = vst [vmem:[#allocation2] sm:$0x1] %v235
      // Predicated region
      $region33: #{_per_batch_losses.1} parent=27 // pred_check
        %p237 = pneg %p217
      $region34: #{_per_batch_losses.1} parent=27 // pred_check_branch
        %239 = sbr.rel (%p237) target = $region36
      $region35: #{_per_batch_losses.1} parent=27 // pred_region
        %v240 = vld [vmem:[#allocation2] sm:$0x1]
        %241 = vst [vmem:[%s216] sm:$0x1] %v240
      $region36: #{_per_batch_losses.1} parent=27 // pred_fallthru
        _
      %p242 = scmp.lt.s32.totalorder %s18, 1
      %s243 = scalar_select %p242, %s18, 1
      %p244 = scmp.lt.s32.totalorder %s19, 0
      %s245 = scalar_select %p244, %s19, 0
      %s246 = sadd.s32 %s245, %s243
      %s247 = scalar_lea.vmem %s2, %s246
      // Predicated region
      $region37: #{_per_batch_losses.1} parent=27 // pred_check
        %p248 = pneg %p112
      $region38: #{_per_batch_losses.1} parent=27 // pred_check_branch
        %250 = sbr.rel (%p248) target = $region40
      $region39: #{_per_batch_losses.1} parent=27 // pred_region
        _
      $region40: #{_per_batch_losses.1} parent=27 // pred_fallthru
        _
    $region28: #{_per_batch_losses.1} parent=5 // pred_fallthru
      _
    %p251 = scmp.le.s32.totalorder 2, %s8
    // Predicated region
    $region41: #{_per_batch_losses.1} parent=5 // pred_check
      %p252 = pneg %p251
    $region42: #{_per_batch_losses.1} parent=5 // pred_check_branch
      %254 = sbr.rel (%p252) target = $region44
    $region43: #{_per_batch_losses.1} parent=5 // pred_region
      %s255 = ssub.s32 %s8, 2
      // Predicated region
      $region45: #{_per_batch_losses.1} parent=43 // pred_check
        %p256 = pneg %p118
      $region46: #{_per_batch_losses.1} parent=43 // pred_check_branch
        %258 = sbr.rel (%p256) target = $region48
      $region47: #{_per_batch_losses.1} parent=43 // pred_region
        %p259 = scmp.lt.s32.totalorder %s21, 1
        %s260 = scalar_select %p259, %s21, 1
        %p261 = scmp.lt.s32.totalorder %s22, 0
        %s262 = scalar_select %p261, %s22, 0
        %s263 = sadd.s32 %s262, %s260
        %s264 = scalar_lea.vmem %s2, %s263
      $region48: #{_per_batch_losses.1} parent=43 // pred_fallthru
        _
    $region44: #{_per_batch_losses.1} parent=5 // pred_fallthru
      _
  $region6: #{_per_batch_losses.1} parent=0 // loop_footer
    %s12 = sadd.s32 1, %s8
  $region7: #{_per_batch_losses.1} parent=0 // loop_footer_branch
    %7 = sbr.rel target = $region3
  $region8: #{_per_batch_losses.1} parent=0 // loop_exit
    _

</llo_original>
